<compile_context>
chip_gen: v5e
topology: v5e:2x2
jax: 0.10.0
libtpu: 0.0.40
codegen_flags: <defaults>
</compile_context>

<pallas_src>
import numpy as np

import jax
import jax.numpy as jnp
from jax.experimental import pallas as pl
from jax.experimental.pallas import tpu as pltpu

_DEFAULT_VMEM_LIMIT = 48 * 1024 * 1024  # explicit scoped-VMEM cap (all gens)


def _round_up(x, m):
    return ((x + m - 1) // m) * m


def _pad_axis(a, axis, target):
    pad = target - a.shape[axis]
    if pad == 0:
        return a
    widths = [(0, 0)] * a.ndim
    widths[axis] = (0, pad)
    return jnp.pad(a, widths)


# ---------------------------------------------------------------------------
# Kernel 1 (throughput path): mix the template bank ONCE (hoisted).
#   W_mixed[K,O] = sum_t coef[t] * Wt[t,K,O]   (emitted in compute dtype)
#   b_mixed[1,O] = sum_t coef[t] * bt[t,O]     (f32)
# grid = (N blocks, K blocks).  The bias output block is resident across the
# inner K axis and written on the last K step (standard resident-output
# pattern), so the K axis is marked "arbitrary".
# ---------------------------------------------------------------------------
def _mix_kernel(coef_ref, wt_ref, bt_ref, w_ref, b_ref):
    T = wt_ref.shape[0]
    acc = wt_ref[0] * coef_ref[0, 0]
    for t in range(1, T):
        acc = acc + wt_ref[t] * coef_ref[t, 0]
    w_ref[...] = acc.astype(w_ref.dtype)

    @pl.when(pl.program_id(1) == pl.num_programs(1) - 1)
    def _():
        b = bt_ref[0:1, :] * coef_ref[0, 0]
        for t in range(1, T):
            b = b + bt_ref[t:t + 1, :] * coef_ref[t, 0]
        b_ref[...] = b.astype(b_ref.dtype)


def _mix_weights_and_bias(coef, wt, bt, bk, bn, compute_dtype, vmem_limit):
    T, Kp, Np = wt.shape
    grid = (Np // bn, Kp // bk)
    return pl.pallas_call(
        _mix_kernel,
        out_shape=(jax.ShapeDtypeStruct((Kp, Np), compute_dtype),
                   jax.ShapeDtypeStruct((1, Np), jnp.float32)),
        grid=grid,
        in_specs=[
            pl.BlockSpec(memory_space=pltpu.MemorySpace.SMEM),       # coef [T,1]
            pl.BlockSpec((T, bk, bn), lambda j, i: (0, i, j)),       # Wt
            pl.BlockSpec((T, bn), lambda j, i: (0, j)),              # bt
        ],
        out_specs=(pl.BlockSpec((bk, bn), lambda j, i: (i, j)),      # W_mixed
                   pl.BlockSpec((1, bn), lambda j, i: (0, j))),      # b_mixed
        compiler_params=pltpu.CompilerParams(
            dimension_semantics=("parallel", "arbitrary"),
            vmem_limit_bytes=vmem_limit),
    )(coef, wt, bt)


# ---------------------------------------------------------------------------
# Kernel 2: tiled MXU matmul + bias:  y = x @ W + b
# grid = (M/bm, N/bn, K/bk), reduction axis LAST.  f32 outputs accumulate
# directly into the resident output block (no scratch, no final copy);
# non-f32 outputs use an f32 VMEM scratch and cast on the last K step.
# ---------------------------------------------------------------------------
def _matmul_bias_kernel(x_ref, w_ref, b_ref, o_ref, *maybe_acc):
    acc_ref = maybe_acc[0] if maybe_acc else o_ref
    k = pl.program_id(2)

    @pl.when(k == 0)
    def _():
        acc_ref[...] = jnp.zeros_like(acc_ref) + b_ref[...]

    acc_ref[...] += jnp.dot(x_ref[...], w_ref[...],
                            preferred_element_type=jnp.float32)

    if maybe_acc:
        @pl.when(k == pl.num_programs(2) - 1)
        def _():
            o_ref[...] = maybe_acc[0][...].astype(o_ref.dtype)


def _matmul_bias(x2, w, b, *, out_dtype, bm, bn, bk, vmem_limit):
    Mp, Kp = x2.shape
    Kp2, Np = w.shape
    assert Kp == Kp2, (Kp, Kp2)
    grid = (Mp // bm, Np // bn, Kp // bk)
    use_scratch = np.dtype(out_dtype) != np.dtype(jnp.float32)
    scratch = [pltpu.VMEM((bm, bn), jnp.float32)] if use_scratch else []
    # NOTE: on v5e, if the K loop is DMA-exposed, pipeline_mode=pl.Buffered(3)
    # on the x/W specs is a cheap fix; default 2-deep is fine on v6e/v7x.
    return pl.pallas_call(
        _matmul_bias_kernel,
        out_shape=jax.ShapeDtypeStruct((Mp, Np), out_dtype),
        grid=grid,
        in_specs=[
            pl.BlockSpec((bm, bk), lambda i, j, k: (i, k)),          # x
            pl.BlockSpec((bk, bn), lambda i, j, k: (k, j)),          # W_mixed
            pl.BlockSpec((1, bn), lambda i, j, k: (0, j)),           # b_mixed
        ],
        out_specs=pl.BlockSpec((bm, bn), lambda i, j, k: (i, j)),
        scratch_shapes=scratch,
        compiler_params=pltpu.CompilerParams(
            dimension_semantics=("parallel", "parallel", "arbitrary"),
            vmem_limit_bytes=vmem_limit),
    )(x2, w, b)


# ---------------------------------------------------------------------------
# Kernel 3 (latency path, single M block): fuse the template mix into the
# matmul.  Each Wt tile is used exactly once, so mixing in-register costs the
# same VPU work as the separate kernel but skips the W_mixed HBM round trip
# and the extra launch.  grid = (N blocks, K blocks), reduction last.
# ---------------------------------------------------------------------------
def _fused_mix_matmul_kernel(coef_ref, x_ref, wt_ref, bt_ref, o_ref, *maybe_acc):
    acc_ref = maybe_acc[0] if maybe_acc else o_ref
    k = pl.program_id(1)
    T = wt_ref.shape[0]

    @pl.when(k == 0)
    def _():
        b = bt_ref[0:1, :] * coef_ref[0, 0]
        for t in range(1, T):
            b = b + bt_ref[t:t + 1, :] * coef_ref[t, 0]
        acc_ref[...] = jnp.zeros_like(acc_ref) + b

    w = wt_ref[0] * coef_ref[0, 0]
    for t in range(1, T):
        w = w + wt_ref[t] * coef_ref[t, 0]
    acc_ref[...] += jnp.dot(x_ref[...], w.astype(x_ref.dtype),
                            preferred_element_type=jnp.float32)

    if maybe_acc:
        @pl.when(k == pl.num_programs(1) - 1)
        def _():
            o_ref[...] = maybe_acc[0][...].astype(o_ref.dtype)


def slinear_apply(x, weight_templates, bias_templates, coef, *,
                  block_m=256, block_n=512, block_k=512,
                  use_bf16_matmul=False,
                  vmem_limit_bytes=_DEFAULT_VMEM_LIMIT,
                  n_valid=None):
    """SLinear forward: y = x @ (sum_t coef[t]*Wt[t]) + sum_t coef[t]*bt[t].

    x:                [..., K]
    weight_templates: [T, Kt, Nt] with Kt >= K (transposed vs PyTorch [O,K,T]);
                      pre-padded banks make the in-call pads no-ops.
    bias_templates:   [T, Nt]
    coef:             [T, 1]
    n_valid:          number of valid output features (<= Nt)
    """
    *lead, K = x.shape
    x2 = x.reshape(-1, K)
    M = x2.shape[0]
    out_dtype = x.dtype
    T, Kt, Nt = weight_templates.shape
    assert Kt >= K, (Kt, K)
    assert bias_templates.shape == (T, Nt), bias_templates.shape
    assert coef.shape == (T, 1), coef.shape
    n_valid = Nt if n_valid is None else n_valid

    bm = min(block_m, _round_up(M, 8))
    bn = min(block_n, _round_up(Nt, 128))
    bk = min(block_k, _round_up(Kt, 128))
    Mp, Kp, Np = _round_up(M, bm), _round_up(Kt, bk), _round_up(Nt, bn)

    compute_dtype = jnp.bfloat16 if use_bf16_matmul else jnp.float32
    coef = coef.astype(jnp.float32)
    # x padded + cast ONCE (bf16 halves HBM/VMEM traffic into the MXU).
    x2 = _pad_axis(_pad_axis(x2, 0, Mp), 1, Kp).astype(compute_dtype)
    # No-ops when the bank was pre-padded at __init__ (the common case).
    wt = _pad_axis(_pad_axis(weight_templates, 1, Kp), 2, Np)
    bt = _pad_axis(bias_templates, 1, Np).astype(jnp.float32)

    if Mp // bm == 1:
        # Latency path: fused mix + matmul (no W_mixed HBM round trip).
        use_scratch = np.dtype(out_dtype) != np.dtype(jnp.float32)
        scratch = [pltpu.VMEM((bm, bn), jnp.float32)] if use_scratch else []
        y = pl.pallas_call(
            _fused_mix_matmul_kernel,
            out_shape=jax.ShapeDtypeStruct((Mp, Np), out_dtype),
            grid=(Np // bn, Kp // bk),
            in_specs=[
                pl.BlockSpec(memory_space=pltpu.MemorySpace.SMEM),     # coef
                pl.BlockSpec((bm, bk), lambda j, k: (0, k)),           # x
                pl.BlockSpec((T, bk, bn), lambda j, k: (0, k, j)),     # Wt
                pl.BlockSpec((T, bn), lambda j, k: (0, j)),            # bt
            ],
            out_specs=pl.BlockSpec((bm, bn), lambda j, k: (0, j)),
            scratch_shapes=scratch,
            compiler_params=pltpu.CompilerParams(
                dimension_semantics=("parallel", "arbitrary"),
                vmem_limit_bytes=vmem_limit_bytes),
        )(coef, x2, wt, bt)
    else:
        # Throughput path: mix once (hoisted out of the M loop), then matmul.
        w_mixed, b_mixed = _mix_weights_and_bias(
            coef, wt, bt, bk, bn, compute_dtype, vmem_limit_bytes)
        y = _matmul_bias(x2, w_mixed, b_mixed, out_dtype=out_dtype,
                         bm=bm, bn=bn, bk=bk, vmem_limit=vmem_limit_bytes)
    return y[:M, :n_valid].reshape(*lead, n_valid)


class SLinear:
    """JAX/Pallas port of the SLinear forward pass (parameters built in-script)."""

    def __init__(self, in_features, out_features, num_specialists=1,
                 hard_sharing=False, use_template_bank=False,
                 num_templates=None, key=None, use_bf16_matmul=False,
                 block_m=256, block_n=512, block_k=512,
                 vmem_limit_bytes=_DEFAULT_VMEM_LIMIT):
        self.in_features = in_features
        self.out_features = out_features
        self.hard_sharing = hard_sharing
        self.use_template_bank = use_template_bank
        self.num_coefficients = 1 if hard_sharing else num_specialists
        # bf16 streams + f32 accumulation: recommended production fast path
        # (results differ from a precision='highest' f32 reference at ~bf16
        # input-rounding level; see the looser tolerances in the demo below).
        self.use_bf16_matmul = use_bf16_matmul
        self._compute_dtype = jnp.bfloat16 if use_bf16_matmul else jnp.float32
        self._vmem = vmem_limit_bytes
        self._bm = block_m
        self._bn = min(block_n, _round_up(out_features, 128))
        self._bk = min(block_k, _round_up(in_features, 128))
        self._Kp = _round_up(in_features, self._bk)
        self._Np = _round_up(out_features, self._bn)

        key = jax.random.PRNGKey(0) if key is None else key
        std = (2.0 / in_features) ** 0.5  # kaiming_normal_, fan_in, gain=sqrt(2)
        if use_template_bank:
            assert num_templates is not None
            kw, kb, kc = jax.random.split(key, 3)
            # PyTorch bank stores [O, K, T]; we keep the transposed [T, K, O]
            # layout so the kernel matmul is lane-dense x[M,K] @ W[K,O].
            self.weight_templates = std * jax.random.normal(
                kw, (num_templates, in_features, out_features), jnp.float32)
            # PyTorch inits bias templates & coefficients to zero; small
            # deterministic random values keep the output non-trivial.
            self.bias_templates = 0.1 * jax.random.normal(
                kb, (num_templates, out_features), jnp.float32)
            self.coefficients = [
                jax.random.normal(jax.random.fold_in(kc, i),
                                  (num_templates, 1), jnp.float32)
                for i in range(self.num_coefficients)]
            # Pad the bank ONCE (per-call pads become no-ops).  Kept f32 so
            # the mix accumulates in f32; only W_mixed is emitted in bf16.
            self._wt_padded = _pad_axis(_pad_axis(
                self.weight_templates, 1, self._Kp), 2, self._Np)
            self._bt_padded = _pad_axis(self.bias_templates, 1, self._Np)
        else:
            # nn.Linear-style [O, K] weights (kept for reference), zero biases.
            self.weights = [
                std * jax.random.normal(jax.random.fold_in(key, i),
                                        (out_features, in_features), jnp.float32)
                for i in range(self.num_coefficients)]
            self.biases = [jnp.zeros((out_features,), jnp.float32)
                           for _ in range(self.num_coefficients)]
            # Compute copies: pre-transposed [Kp, Np], pre-padded and pre-cast
            # once at init -> no per-call .T / pad / mix-kernel round trip.
            self._w_ko = [
                _pad_axis(_pad_axis(w.T, 0, self._Kp), 1, self._Np)
                .astype(self._compute_dtype) for w in self.weights]
            self._b_row = [
                _pad_axis(b[None, :], 1, self._Np).astype(jnp.float32)
                for b in self.biases]

    # TODO(synk): tie()/release() are training-time parameter bookkeeping
    # (deepcopy / state_dict copies); they do not affect the forward compute
    # and are not ported.

    def _plain_forward(self, x, w, b):
        """Plain-Linear fast path: pre-mixed/pre-transposed W, no mix kernel."""
        *lead, K = x.shape
        x2 = x.reshape(-1, K)
        M = x2.shape[0]
        out_dtype = x.dtype
        Kp, Np = w.shape
        bm = min(self._bm, _round_up(M, 8))
        Mp = _round_up(M, bm)
        x2 = _pad_axis(_pad_axis(x2, 0, Mp), 1, Kp).astype(self._compute_dtype)
        y = _matmul_bias(x2, w, b, out_dtype=out_dtype, bm=bm, bn=self._bn,
                         bk=self._bk, vmem_limit=self._vmem)
        return y[:M, :self.out_features].reshape(*lead, self.out_features)

    def __call__(self, x, specialist=0, average_specialists=False):
        if self.use_template_bank:
            if average_specialists:
                coef = sum(self.coefficients) / self.num_coefficients
            else:
                idx = 0 if self.hard_sharing else specialist
                coef = self.coefficients[idx]
            return slinear_apply(
                x, self._wt_padded, self._bt_padded, coef,
                block_m=self._bm, block_n=self._bn, block_k=self._bk,
                use_bf16_matmul=self.use_bf16_matmul,
                vmem_limit_bytes=self._vmem, n_valid=self.out_features)
        if average_specialists:
            # Average of affine maps == affine map of averaged params; reuse
            # the bank path with uniform coefficients (one launch, one x read).
            wt = jnp.stack(self._w_ko)                        # [C, Kp, Np]
            bt = jnp.stack([b[0] for b in self._b_row])       # [C, Np]
            coef = jnp.full((self.num_coefficients, 1),
                            1.0 / self.num_coefficients, jnp.float32)
            return slinear_apply(
                x, wt, bt, coef,
                block_m=self._bm, block_n=self._bn, block_k=self._bk,
                use_bf16_matmul=self.use_bf16_matmul,
                vmem_limit_bytes=self._vmem, n_valid=self.out_features)
        idx = 0 if self.hard_sharing else specialist
        return self._plain_forward(x, self._w_ko[idx], self._b_row[idx])


if __name__ == "__main__":
    key = jax.random.PRNGKey(0)
    kx, kp, kx2, kp2 = jax.random.split(key, 4)

    # --- 1) template bank, small shapes -> fused mix+matmul latency path ---
    batch, in_features, out_features = 16, 32, 32
    x = jax.random.normal(kx, (batch, in_features), jnp.float32)
    layer = SLinear(in_features, out_features, num_specialists=3,
                    hard_sharing=False, use_template_bank=True,
                    num_templates=4, key=kp)
    y = jax.block_until_ready(layer(x, specialist=1))
    coef = layer.coefficients[1]
    w_ref = jnp.einsum('tko,tz->ko', layer.weight_templates, coef,
                       precision='highest')
    b_ref = jnp.einsum('to,tz->o', layer.bias_templates, coef,
                       precision='highest')
    y_ref = jnp.matmul(x, w_ref, precision='highest') + b_ref
    assert y.shape == (batch, out_features)
    assert jnp.allclose(y, y_ref, atol=2e-2, rtol=2e-2), "fused bank path mismatch"

    # --- 2) template bank, multi-tile -> hoisted mix kernel + MXU matmul ---
    b2, k2, o2 = 640, 1024, 640
    x_big = jax.random.normal(kx2, (b2, k2), jnp.float32)
    layer_big = SLinear(k2, o2, num_specialists=2, hard_sharing=False,
                        use_template_bank=True, num_templates=3, key=kp2)
    y_big = jax.block_until_ready(layer_big(x_big, specialist=0))
    cb = layer_big.coefficients[0]
    wb = jnp.einsum('tko,tz->ko', layer_big.weight_templates, cb,
                    precision='highest')
    bb = jnp.einsum('to,tz->o', layer_big.bias_templates, cb,
                    precision='highest')
    yb_ref = jnp.matmul(x_big, wb, precision='highest') + bb
    assert jnp.allclose(y_big, yb_ref, atol=2e-2, rtol=2e-2), "tiled f32 path mismatch"

    # --- 3) bf16 fast path (bf16 x/W streams, f32 accumulation) ---
    layer_bf16 = SLinear(k2, o2, num_specialists=2, hard_sharing=False,
                         use_template_bank=True, num_templates=3, key=kp2,
                         use_bf16_matmul=True)
    y_bf16 = jax.block_until_ready(layer_bf16(x_big, specialist=0))
    assert jnp.allclose(y_bf16, yb_ref, atol=2e-1, rtol=5e-2), "bf16 path mismatch"

    # --- 3b) bf16 in/out (exercises the f32 scratch-accumulator variant) ---
    y_bf16_io = jax.block_until_ready(
        layer_bf16(x_big.astype(jnp.bfloat16), specialist=0))
    assert y_bf16_io.dtype == jnp.bfloat16
    assert jnp.allclose(y_bf16_io.astype(jnp.float32), yb_ref,
                        atol=3e-1, rtol=1e-1), "bf16-output path mismatch"

    # --- 4) plain-Linear path: direct pre-mixed matmul + averaged specialists ---
    layer2 = SLinear(in_features, out_features, num_specialists=2,
                     hard_sharing=False, use_template_bank=False, key=kp)
    y2a = jax.block_until_ready(layer2(x, specialist=1))
    y2a_ref = (jnp.matmul(x, layer2.weights[1].T, precision='highest')
               + layer2.biases[1])
    assert jnp.allclose(y2a, y2a_ref, atol=2e-2, rtol=2e-2), "plain path mismatch"

    y2 = jax.block_until_ready(layer2(x, specialist=0, average_specialists=True))
    y2_ref = sum(jnp.matmul(x, w.T, precision='highest') + b
                 for w, b in zip(layer2.weights, layer2.biases)) / 2
    assert jnp.allclose(y2, y2_ref, atol=2e-2, rtol=2e-2), "averaged plain mismatch"

    print("KERNEL_OK")
</pallas_src>

<mosaic_0001>
module attributes {stable_mosaic.version = 11 : i64} {
  func.func @_fused_mix_matmul_kernel(%arg0: i32, %arg1: i32, %arg2: memref<4x1xf32, #tpu.memory_space<smem>>, %arg3: memref<16x128xf32, #tpu.memory_space<vmem>>, %arg4: memref<4x128x128xf32, #tpu.memory_space<vmem>>, %arg5: memref<4x128xf32, #tpu.memory_space<vmem>>, %arg6: memref<16x128xf32, #tpu.memory_space<vmem>>) attributes {dimension_semantics = [#tpu.dimension_semantics<parallel>, #tpu.dimension_semantics<arbitrary>], iteration_bounds = array<i64: 1, 1>, scalar_prefetch = 0 : i64, scratch_operands = 0 : i64, tpu.core_type = #tpu.core_type<tc>, window_params = [{transform_indices = @transform_0, window_bounds = array<i64: 4, 1>}, {transform_indices = @transform_1, window_bounds = array<i64: 16, 128>}, {transform_indices = @transform_2, window_bounds = array<i64: 4, 128, 128>}, {transform_indices = @transform_3, window_bounds = array<i64: 4, 128>}, {transform_indices = @transform_4, window_bounds = array<i64: 16, 128>}]} {
    %c0_i32 = arith.constant 0 : i32
    %0 = arith.cmpi eq, %arg1, %c0_i32 : i32
    %1 = arith.extui %0 : i1 to i32
    %c0_i32_0 = arith.constant 0 : i32
    %2 = arith.cmpi ne, %1, %c0_i32_0 : i32
    scf.if %2 {
      %c0_23 = arith.constant 0 : index
      %c0_24 = arith.constant 0 : index
      %31 = vector.load %arg5[%c0_23, %c0_24] : memref<4x128xf32, #tpu.memory_space<vmem>>, vector<1x128xf32>
      %c0_25 = arith.constant 0 : index
      %c0_26 = arith.constant 0 : index
      %32 = memref.load %arg2[%c0_25, %c0_26] : memref<4x1xf32, #tpu.memory_space<smem>>
      %33 = vector.broadcast %32 : f32 to vector<1x128xf32>
      %34 = arith.mulf %31, %33 : vector<1x128xf32>
      %c1_27 = arith.constant 1 : index
      %c0_28 = arith.constant 0 : index
      %35 = vector.load %arg5[%c1_27, %c0_28] : memref<4x128xf32, #tpu.memory_space<vmem>>, vector<1x128xf32>
      %c1_29 = arith.constant 1 : index
      %c0_30 = arith.constant 0 : index
      %36 = memref.load %arg2[%c1_29, %c0_30] : memref<4x1xf32, #tpu.memory_space<smem>>
      %37 = vector.broadcast %36 : f32 to vector<1x128xf32>
      %38 = arith.mulf %35, %37 : vector<1x128xf32>
      %39 = arith.addf %34, %38 : vector<1x128xf32>
      %c2_31 = arith.constant 2 : index
      %c0_32 = arith.constant 0 : index
      %40 = vector.load %arg5[%c2_31, %c0_32] : memref<4x128xf32, #tpu.memory_space<vmem>>, vector<1x128xf32>
      %c2_33 = arith.constant 2 : index
      %c0_34 = arith.constant 0 : index
      %41 = memref.load %arg2[%c2_33, %c0_34] : memref<4x1xf32, #tpu.memory_space<smem>>
      %42 = vector.broadcast %41 : f32 to vector<1x128xf32>
      %43 = arith.mulf %40, %42 : vector<1x128xf32>
      %44 = arith.addf %39, %43 : vector<1x128xf32>
      %c3_35 = arith.constant 3 : index
      %c0_36 = arith.constant 0 : index
      %45 = vector.load %arg5[%c3_35, %c0_36] : memref<4x128xf32, #tpu.memory_space<vmem>>, vector<1x128xf32>
      %c3_37 = arith.constant 3 : index
      %c0_38 = arith.constant 0 : index
      %46 = memref.load %arg2[%c3_37, %c0_38] : memref<4x1xf32, #tpu.memory_space<smem>>
      %47 = vector.broadcast %46 : f32 to vector<1x128xf32>
      %48 = arith.mulf %45, %47 : vector<1x128xf32>
      %49 = arith.addf %44, %48 : vector<1x128xf32>
      %cst_39 = arith.constant 0.000000e+00 : f32
      %50 = vector.broadcast %cst_39 : f32 to vector<16x128xf32>
      %51 = vector.broadcast %49 : vector<1x128xf32> to vector<16x128xf32>
      %52 = arith.addf %50, %51 : vector<16x128xf32>
      %c0_40 = arith.constant 0 : index
      %c0_41 = arith.constant 0 : index
      %53 = vector.load %arg6[%c0_40, %c0_41] : memref<16x128xf32, #tpu.memory_space<vmem>>, vector<16x128xf32>
      tpu.vector_store %arg6[%c0_40, %c0_41], %52 {strides = array<i32>} : memref<16x128xf32, #tpu.memory_space<vmem>>, vector<16x128xf32>,
    } else {
    }
    %c0 = arith.constant 0 : index
    %c0_1 = arith.constant 0 : index
    %c0_2 = arith.constant 0 : index
    %3 = vector.load %arg4[%c0, %c0_1, %c0_2] : memref<4x128x128xf32, #tpu.memory_space<vmem>>, vector<1x128x128xf32>
    %4 = vector.shape_cast %3 : vector<1x128x128xf32> to vector<128x128xf32>
    %c0_3 = arith.constant 0 : index
    %c0_4 = arith.constant 0 : index
    %5 = memref.load %arg2[%c0_3, %c0_4] : memref<4x1xf32, #tpu.memory_space<smem>>
    %6 = vector.broadcast %5 : f32 to vector<128x128xf32>
    %7 = arith.mulf %4, %6 : vector<128x128xf32>
    %c1 = arith.constant 1 : index
    %c0_5 = arith.constant 0 : index
    %c0_6 = arith.constant 0 : index
    %8 = vector.load %arg4[%c1, %c0_5, %c0_6] : memref<4x128x128xf32, #tpu.memory_space<vmem>>, vector<1x128x128xf32>
    %9 = vector.shape_cast %8 : vector<1x128x128xf32> to vector<128x128xf32>
    %c1_7 = arith.constant 1 : index
    %c0_8 = arith.constant 0 : index
    %10 = memref.load %arg2[%c1_7, %c0_8] : memref<4x1xf32, #tpu.memory_space<smem>>
    %11 = vector.broadcast %10 : f32 to vector<128x128xf32>
    %12 = arith.mulf %9, %11 : vector<128x128xf32>
    %13 = arith.addf %7, %12 : vector<128x128xf32>
    %c2 = arith.constant 2 : index
    %c0_9 = arith.constant 0 : index
    %c0_10 = arith.constant 0 : index
    %14 = vector.load %arg4[%c2, %c0_9, %c0_10] : memref<4x128x128xf32, #tpu.memory_space<vmem>>, vector<1x128x128xf32>
    %15 = vector.shape_cast %14 : vector<1x128x128xf32> to vector<128x128xf32>
    %c2_11 = arith.constant 2 : index
    %c0_12 = arith.constant 0 : index
    %16 = memref.load %arg2[%c2_11, %c0_12] : memref<4x1xf32, #tpu.memory_space<smem>>
    %17 = vector.broadcast %16 : f32 to vector<128x128xf32>
    %18 = arith.mulf %15, %17 : vector<128x128xf32>
    %19 = arith.addf %13, %18 : vector<128x128xf32>
    %c3 = arith.constant 3 : index
    %c0_13 = arith.constant 0 : index
    %c0_14 = arith.constant 0 : index
    %20 = vector.load %arg4[%c3, %c0_13, %c0_14] : memref<4x128x128xf32, #tpu.memory_space<vmem>>, vector<1x128x128xf32>
    %21 = vector.shape_cast %20 : vector<1x128x128xf32> to vector<128x128xf32>
    %c3_15 = arith.constant 3 : index
    %c0_16 = arith.constant 0 : index
    %22 = memref.load %arg2[%c3_15, %c0_16] : memref<4x1xf32, #tpu.memory_space<smem>>
    %23 = vector.broadcast %22 : f32 to vector<128x128xf32>
    %24 = arith.mulf %21, %23 : vector<128x128xf32>
    %25 = arith.addf %19, %24 : vector<128x128xf32>
    %c0_17 = arith.constant 0 : index
    %c0_18 = arith.constant 0 : index
    %26 = vector.load %arg6[%c0_17, %c0_18] : memref<16x128xf32, #tpu.memory_space<vmem>>, vector<16x128xf32>
    %c0_19 = arith.constant 0 : index
    %c0_20 = arith.constant 0 : index
    %27 = vector.load %arg3[%c0_19, %c0_20] : memref<16x128xf32, #tpu.memory_space<vmem>>, vector<16x128xf32>
    %cst = arith.constant dense<0.000000e+00> : vector<16x128xf32>
    %28 = tpu.matmul %27, %25, %cst {dimension_numbers = #tpu.dot_dimension_numbers<[1], [0], [0], [1], [0, 0, 1, 1], [], []>} : vector<16x128xf32>, vector<128x128xf32>, vector<16x128xf32> -> vector<16x128xf32>
    %29 = arith.addf %26, %28 : vector<16x128xf32>
    %c0_21 = arith.constant 0 : index
    %c0_22 = arith.constant 0 : index
    %30 = vector.load %arg6[%c0_21, %c0_22] : memref<16x128xf32, #tpu.memory_space<vmem>>, vector<16x128xf32>
    tpu.vector_store %arg6[%c0_21, %c0_22], %29 {strides = array<i32>} : memref<16x128xf32, #tpu.memory_space<vmem>>, vector<16x128xf32>,
    return
  }
  func.func @transform_0(%arg0: i32, %arg1: i32) -> (i32, i32) {
    %c0_i32 = arith.constant 0 : i32
    %c0_i32_0 = arith.constant 0 : i32
    %c0_i32_1 = arith.constant 0 : i32
    return %c0_i32, %c0_i32_0 : i32, i32
  }
  func.func @transform_1(%arg0: i32, %arg1: i32) -> (i32, i32) {
    %c0_i32 = arith.constant 0 : i32
    %c0_i32_0 = arith.constant 0 : i32
    return %c0_i32, %arg1 : i32, i32
  }
  func.func @transform_2(%arg0: i32, %arg1: i32) -> (i32, i32, i32) {
    %c0_i32 = arith.constant 0 : i32
    %c0_i32_0 = arith.constant 0 : i32
    return %c0_i32, %arg1, %arg0 : i32, i32, i32
  }
  func.func @transform_3(%arg0: i32, %arg1: i32) -> (i32, i32) {
    %c0_i32 = arith.constant 0 : i32
    %c0_i32_0 = arith.constant 0 : i32
    return %c0_i32, %arg0 : i32, i32
  }
  func.func @transform_4(%arg0: i32, %arg1: i32) -> (i32, i32) {
    %c0_i32 = arith.constant 0 : i32
    %c0_i32_0 = arith.constant 0 : i32
    return %c0_i32, %arg0 : i32, i32
  }
}

</mosaic_0001>

<llo_original>
// kernel: tpu_custom_call.1
$region0: #{tpu_custom_call.1}
  #allocation0 [shape = 'u32[]', space=smem, size = 0x4, offset = 0x4, fixed_abs, tag = 'smem constant byte address 0x4 - core index']
  #allocation1 [shape = 'u32[72,128]{1,0:T(1,128)}', space=vmem, size = 0x9000, scoped, tag = 'internal scratch']
  %s0 = inlined_call_operand.vmem [shape: f32[4,1], index: 0, kind: input, shape index: {}]
  %s1 = inlined_call_operand.hbm [shape: f32[16,128], index: 1, kind: input, shape index: {}]
  %s2 = inlined_call_operand.hbm [shape: f32[4,128,128], index: 2, kind: input, shape index: {}]
  %s3 = inlined_call_operand.vmem [shape: f32[4,128], index: 3, kind: input, shape index: {}]
  %s4 = inlined_call_operand.hbm [shape: f32[16,128], index: 4, kind: output, shape index: {}]
  %s5 = sld [smem:[#allocation0]]
  $region42: #{tpu_custom_call.1} parent=0
    _
  %s7 = ssub.s32 1, %s5
  %s8 = scalar_select 0, %s7, %s5
  $region1: #{tpu_custom_call.1} parent=0
    #allocation2 [shape = 'u8[2048]{0}', space=smem, size = 0x800, scoped, tag = 'input window, operand 0, single buffered']
    #allocation3 [shape = 's32[1]{0}', space=sflag, size = 0x4, scoped, tag = 'scoped memory for tpu_custom_call.1']
    #allocation4 [shape = 's32[1]{0}', space=sflag, size = 0x4, scoped, tag = 'scoped memory for tpu_custom_call.1']
    #allocation5 [shape = 's32[1]{0}', space=sflag, size = 0x4, scoped, tag = 'scoped memory for tpu_custom_call.1']
    #allocation6 [shape = 'u8[8192]{0}', space=vmem, size = 0x2000, scoped, tag = 'input window, operand 1, single buffered']
    #allocation7 [shape = 'u8[262144]{0}', space=vmem, size = 0x40000, scoped, tag = 'input window, operand 2, single buffered']
    #allocation8 [shape = 's32[1]{0}', space=sflag, size = 0x4, scoped, tag = 'scoped memory for tpu_custom_call.1']
    #allocation9 [shape = 'u8[8192]{0}', space=vmem, size = 0x2000, scoped, tag = 'output window, operand 0, single buffered']
    %9 = vsyncpa [#allocation5], 0
    %10 = vsyncpa [#allocation3], 0
    %11 = vsyncpa [#allocation8], 0
    %12 = vsyncpa [#allocation4], 0
    // Predicated region
    $region2: #{tpu_custom_call.1} parent=1 // pred_check
      _
    $region3: #{tpu_custom_call.1} parent=1 // pred_check_branch
      %14 = sbr.rel (0) target = $region5
    $region4: #{tpu_custom_call.1} parent=1 // pred_region
      %16 = vsyncadd [#allocation5], 0
      %s18 = sshll.u32 %s0, 4
      %s19 = int_to_ptr.vmem [resolvable:$true] %s18
      %21 = dma.vmem_to_smem %s19, 64, [#allocation2], [#allocation5]
    $region5: #{tpu_custom_call.1} parent=1 // pred_fallthru
      _
    // Predicated region
    $region6: #{tpu_custom_call.1} parent=1 // pred_check
      _
    $region7: #{tpu_custom_call.1} parent=1 // pred_check_branch
      %23 = sbr.rel (0) target = $region9
    $region8: #{tpu_custom_call.1} parent=1 // pred_region
      %25 = vsyncadd [#allocation3], 0
      %s26 = sshll.u32 %s1, 4
      %s27 = int_to_ptr.hbm [resolvable:$true] %s26
      %s28 = sshll.u32 [#allocation6], 4
      %s29 = int_to_ptr.vmem [resolvable:$true] %s28
      %34 = dma.hbm_to_vmem [thread:$0]  %s27, 256, %s29, [#allocation3], 128, 128, 8
    $region9: #{tpu_custom_call.1} parent=1 // pred_fallthru
      _
    // Predicated region
    $region10: #{tpu_custom_call.1} parent=1 // pred_check
      _
    $region11: #{tpu_custom_call.1} parent=1 // pred_check_branch
      %36 = sbr.rel (0) target = $region13
    $region12: #{tpu_custom_call.1} parent=1 // pred_region
      %38 = vsyncadd [#allocation8], 0
      %s39 = sshll.u32 %s2, 4
      %s40 = int_to_ptr.hbm [resolvable:$true] %s39
      %s41 = sshll.u32 [#allocation7], 4
      %s42 = int_to_ptr.vmem [resolvable:$true] %s41
      %47 = dma.hbm_to_vmem [thread:$0]  %s40, 8192, %s42, [#allocation8], 128, 128, 8
    $region13: #{tpu_custom_call.1} parent=1 // pred_fallthru
      _
    // Predicated region
    $region14: #{tpu_custom_call.1} parent=1 // pred_check
      _
    $region15: #{tpu_custom_call.1} parent=1 // pred_check_branch
      %49 = sbr.rel (0) target = $region17
    $region16: #{tpu_custom_call.1} parent=1 // pred_region
      _
    $region17: #{tpu_custom_call.1} parent=1 // pred_fallthru
      _
    // Predicated region
    $region18: #{tpu_custom_call.1} parent=1 // pred_check
      _
    $region19: #{tpu_custom_call.1} parent=1 // pred_check_branch
      %51 = sbr.rel (0) target = $region21
    $region20: #{tpu_custom_call.1} parent=1 // pred_region
      %53 = dma.done [#allocation5], 64
    $region21: #{tpu_custom_call.1} parent=1 // pred_fallthru
      _
    // Predicated region
    $region22: #{tpu_custom_call.1} parent=1 // pred_check
      _
    $region23: #{tpu_custom_call.1} parent=1 // pred_check_branch
      %55 = sbr.rel (0) target = $region25
    $region24: #{tpu_custom_call.1} parent=1 // pred_region
      %57 = dma.done [#allocation3], 256
    $region25: #{tpu_custom_call.1} parent=1 // pred_fallthru
      _
    // Predicated region
    $region26: #{tpu_custom_call.1} parent=1 // pred_check
      _
    $region27: #{tpu_custom_call.1} parent=1 // pred_check_branch
      %59 = sbr.rel (0) target = $region29
    $region28: #{tpu_custom_call.1} parent=1 // pred_region
      %61 = dma.done [#allocation8], 8192
    $region29: #{tpu_custom_call.1} parent=1 // pred_fallthru
      _
    %62 = sfence
    %p63 = scmp.eq.s32.totalorder 0, 0
    // Predicated region
    $region30: #{tpu_custom_call.1} parent=1 // pred_check
      %p64 = pneg %p63
    $region31: #{tpu_custom_call.1} parent=1 // pred_check_branch
      %66 = sbr.rel (%p64) target = $region33
    $region32: #{tpu_custom_call.1} parent=1 // pred_region
      %v67 = vld [vmem:[%s3] sm:$0x1]
      %s68 = sld [smem:[#allocation2]]
      %v69 = vstv %s68
      %v70 = vmul.f32 %v67, %v69
      %v71 = vld [vmem:[%s3 + $0x1] sm:$0x1]
      %s72 = sld [smem:[#allocation2 + $0x80]]
      %v73 = vstv %s72
      %v74 = vmul.f32 %v71, %v73
      %v75 = vadd.f32 %v70, %v74
      %v76 = vld [vmem:[%s3 + $0x2] sm:$0x1]
      %s77 = sld [smem:[#allocation2 + $0x100]]
      %v78 = vstv %s77
      %v79 = vmul.f32 %v76, %v78
      %v80 = vadd.f32 %v75, %v79
      %v81 = vld [vmem:[%s3 + $0x3] sm:$0x1]
      %s82 = sld [smem:[#allocation2 + $0x180]]
      %v83 = vstv %s82
      %v84 = vmul.f32 %v81, %v83
      %v85 = vadd.f32 %v80, %v84
      %v86 = vperm.slane %v85, 0
      %v87 = vadd.f32 %v86, 0.0
      %88 = vst [vmem:[#allocation9] sm:$0xff] %v87
      %89 = vst [vmem:[#allocation9 + $0x8] sm:$0xff] %v87
    $region33: #{tpu_custom_call.1} parent=1 // pred_fallthru
      _
    %v90 = vld [vmem:[#allocation7] sm:$0xff]
    %v91 = vld [vmem:[#allocation7 + $0x8] sm:$0xff]
    %v92 = vld [vmem:[#allocation7 + $0x10] sm:$0xff]
    %v93 = vld [vmem:[#allocation7 + $0x18] sm:$0xff]
    %v94 = vld [vmem:[#allocation7 + $0x20] sm:$0xff]
    %v95 = vld [vmem:[#allocation7 + $0x28] sm:$0xff]
    %v96 = vld [vmem:[#allocation7 + $0x30] sm:$0xff]
    %v97 = vld [vmem:[#allocation7 + $0x38] sm:$0xff]
    %v98 = vld [vmem:[#allocation7 + $0x40] sm:$0xff]
    %v99 = vld [vmem:[#allocation7 + $0x48] sm:$0xff]
    %v100 = vld [vmem:[#allocation7 + $0x50] sm:$0xff]
    %v101 = vld [vmem:[#allocation7 + $0x58] sm:$0xff]
    %v102 = vld [vmem:[#allocation7 + $0x60] sm:$0xff]
    %v103 = vld [vmem:[#allocation7 + $0x68] sm:$0xff]
    %v104 = vld [vmem:[#allocation7 + $0x70] sm:$0xff]
    %v105 = vld [vmem:[#allocation7 + $0x78] sm:$0xff]
    %s106 = sld [smem:[#allocation2]]
    %v107 = vstv %s106
    %v108 = vmul.f32 %v90, %v107
    %v109 = vmul.f32 %v91, %v107
    %v110 = vmul.f32 %v92, %v107
    %v111 = vmul.f32 %v93, %v107
    %v112 = vmul.f32 %v94, %v107
    %v113 = vmul.f32 %v95, %v107
    %v114 = vmul.f32 %v96, %v107
    %v115 = vmul.f32 %v97, %v107
    %v116 = vmul.f32 %v98, %v107
    %v117 = vmul.f32 %v99, %v107
    %v118 = vmul.f32 %v100, %v107
    %v119 = vmul.f32 %v101, %v107
    %v120 = vmul.f32 %v102, %v107
    %v121 = vmul.f32 %v103, %v107
    %v122 = vmul.f32 %v104, %v107
    %v123 = vmul.f32 %v105, %v107
    %s124 = scalar_lea.vmem [#allocation7], 128
    %v125 = vld [vmem:[%s124] sm:$0xff]
    %v126 = vld [vmem:[%s124 + $0x8] sm:$0xff]
    %v127 = vld [vmem:[%s124 + $0x10] sm:$0xff]
    %v128 = vld [vmem:[%s124 + $0x18] sm:$0xff]
    %v129 = vld [vmem:[%s124 + $0x20] sm:$0xff]
    %v130 = vld [vmem:[%s124 + $0x28] sm:$0xff]
    %v131 = vld [vmem:[%s124 + $0x30] sm:$0xff]
    %v132 = vld [vmem:[%s124 + $0x38] sm:$0xff]
    %v133 = vld [vmem:[%s124 + $0x40] sm:$0xff]
    %v134 = vld [vmem:[%s124 + $0x48] sm:$0xff]
    %v135 = vld [vmem:[%s124 + $0x50] sm:$0xff]
    %v136 = vld [vmem:[%s124 + $0x58] sm:$0xff]
    %v137 = vld [vmem:[%s124 + $0x60] sm:$0xff]
    %v138 = vld [vmem:[%s124 + $0x68] sm:$0xff]
    %v139 = vld [vmem:[%s124 + $0x70] sm:$0xff]
    %v140 = vld [vmem:[%s124 + $0x78] sm:$0xff]
    %s141 = sld [smem:[#allocation2 + $0x80]]
    %v142 = vstv %s141
    %v143 = vmul.f32 %v125, %v142
    %v144 = vmul.f32 %v126, %v142
    %v145 = vmul.f32 %v127, %v142
    %v146 = vmul.f32 %v128, %v142
    %v147 = vmul.f32 %v129, %v142
    %v148 = vmul.f32 %v130, %v142
    %v149 = vmul.f32 %v131, %v142
    %v150 = vmul.f32 %v132, %v142
    %v151 = vmul.f32 %v133, %v142
    %v152 = vmul.f32 %v134, %v142
    %v153 = vmul.f32 %v135, %v142
    %v154 = vmul.f32 %v136, %v142
    %v155 = vmul.f32 %v137, %v142
    %v156 = vmul.f32 %v138, %v142
    %v157 = vmul.f32 %v139, %v142
    %v158 = vmul.f32 %v140, %v142
    %v159 = vadd.f32 %v108, %v143
    %v160 = vadd.f32 %v109, %v144
    %v161 = vadd.f32 %v110, %v145
    %v162 = vadd.f32 %v111, %v146
    %v163 = vadd.f32 %v112, %v147
    %v164 = vadd.f32 %v113, %v148
    %v165 = vadd.f32 %v114, %v149
    %v166 = vadd.f32 %v115, %v150
    %v167 = vadd.f32 %v116, %v151
    %v168 = vadd.f32 %v117, %v152
    %v169 = vadd.f32 %v118, %v153
    %v170 = vadd.f32 %v119, %v154
    %v171 = vadd.f32 %v120, %v155
    %v172 = vadd.f32 %v121, %v156
    %v173 = vadd.f32 %v122, %v157
    %v174 = vadd.f32 %v123, %v158
    %s175 = scalar_lea.vmem [#allocation7], 256
    %v176 = vld [vmem:[%s175] sm:$0xff]
    %v177 = vld [vmem:[%s175 + $0x8] sm:$0xff]
    %v178 = vld [vmem:[%s175 + $0x10] sm:$0xff]
    %v179 = vld [vmem:[%s175 + $0x18] sm:$0xff]
    %v180 = vld [vmem:[%s175 + $0x20] sm:$0xff]
    %v181 = vld [vmem:[%s175 + $0x28] sm:$0xff]
    %v182 = vld [vmem:[%s175 + $0x30] sm:$0xff]
    %v183 = vld [vmem:[%s175 + $0x38] sm:$0xff]
    %v184 = vld [vmem:[%s175 + $0x40] sm:$0xff]
    %v185 = vld [vmem:[%s175 + $0x48] sm:$0xff]
    %v186 = vld [vmem:[%s175 + $0x50] sm:$0xff]
    %v187 = vld [vmem:[%s175 + $0x58] sm:$0xff]
    %v188 = vld [vmem:[%s175 + $0x60] sm:$0xff]
    %v189 = vld [vmem:[%s175 + $0x68] sm:$0xff]
    %v190 = vld [vmem:[%s175 + $0x70] sm:$0xff]
    %v191 = vld [vmem:[%s175 + $0x78] sm:$0xff]
    %s192 = sld [smem:[#allocation2 + $0x100]]
    %v193 = vstv %s192
    %v194 = vmul.f32 %v176, %v193
    %v195 = vmul.f32 %v177, %v193
    %v196 = vmul.f32 %v178, %v193
    %v197 = vmul.f32 %v179, %v193
    %v198 = vmul.f32 %v180, %v193
    %v199 = vmul.f32 %v181, %v193
    %v200 = vmul.f32 %v182, %v193
    %v201 = vmul.f32 %v183, %v193
    %v202 = vmul.f32 %v184, %v193
    %v203 = vmul.f32 %v185, %v193
    %v204 = vmul.f32 %v186, %v193
    %v205 = vmul.f32 %v187, %v193
    %v206 = vmul.f32 %v188, %v193
    %v207 = vmul.f32 %v189, %v193
    %v208 = vmul.f32 %v190, %v193
    %v209 = vmul.f32 %v191, %v193
    %v210 = vadd.f32 %v159, %v194
    %v211 = vadd.f32 %v160, %v195
    %v212 = vadd.f32 %v161, %v196
    %v213 = vadd.f32 %v162, %v197
    %v214 = vadd.f32 %v163, %v198
    %v215 = vadd.f32 %v164, %v199
    %v216 = vadd.f32 %v165, %v200
    %v217 = vadd.f32 %v166, %v201
    %v218 = vadd.f32 %v167, %v202
    %v219 = vadd.f32 %v168, %v203
    %v220 = vadd.f32 %v169, %v204
    %v221 = vadd.f32 %v170, %v205
    %v222 = vadd.f32 %v171, %v206
    %v223 = vadd.f32 %v172, %v207
    %v224 = vadd.f32 %v173, %v208
    %v225 = vadd.f32 %v174, %v209
    %s226 = scalar_lea.vmem [#allocation7], 384
    %v227 = vld [vmem:[%s226] sm:$0xff]
    %v228 = vld [vmem:[%s226 + $0x8] sm:$0xff]
    %v229 = vld [vmem:[%s226 + $0x10] sm:$0xff]
    %v230 = vld [vmem:[%s226 + $0x18] sm:$0xff]
    %v231 = vld [vmem:[%s226 + $0x20] sm:$0xff]
    %v232 = vld [vmem:[%s226 + $0x28] sm:$0xff]
    %v233 = vld [vmem:[%s226 + $0x30] sm:$0xff]
    %v234 = vld [vmem:[%s226 + $0x38] sm:$0xff]
    %v235 = vld [vmem:[%s226 + $0x40] sm:$0xff]
    %v236 = vld [vmem:[%s226 + $0x48] sm:$0xff]
    %v237 = vld [vmem:[%s226 + $0x50] sm:$0xff]
    %v238 = vld [vmem:[%s226 + $0x58] sm:$0xff]
    %v239 = vld [vmem:[%s226 + $0x60] sm:$0xff]
    %v240 = vld [vmem:[%s226 + $0x68] sm:$0xff]
    %v241 = vld [vmem:[%s226 + $0x70] sm:$0xff]
    %v242 = vld [vmem:[%s226 + $0x78] sm:$0xff]
    %s243 = sld [smem:[#allocation2 + $0x180]]
    %v244 = vstv %s243
    %v245 = vmul.f32 %v227, %v244
    %v246 = vmul.f32 %v228, %v244
    %v247 = vmul.f32 %v229, %v244
    %v248 = vmul.f32 %v230, %v244
    %v249 = vmul.f32 %v231, %v244
    %v250 = vmul.f32 %v232, %v244
    %v251 = vmul.f32 %v233, %v244
    %v252 = vmul.f32 %v234, %v244
    %v253 = vmul.f32 %v235, %v244
    %v254 = vmul.f32 %v236, %v244
    %v255 = vmul.f32 %v237, %v244
    %v256 = vmul.f32 %v238, %v244
    %v257 = vmul.f32 %v239, %v244
    %v258 = vmul.f32 %v240, %v244
    %v259 = vmul.f32 %v241, %v244
    %v260 = vmul.f32 %v242, %v244
    %v261 = vadd.f32 %v210, %v245
    %v262 = vadd.f32 %v211, %v246
    %v263 = vadd.f32 %v212, %v247
    %v264 = vadd.f32 %v213, %v248
    %v265 = vadd.f32 %v214, %v249
    %v266 = vadd.f32 %v215, %v250
    %v267 = vadd.f32 %v216, %v251
    %v268 = vadd.f32 %v217, %v252
    %v269 = vadd.f32 %v218, %v253
    %v270 = vadd.f32 %v219, %v254
    %v271 = vadd.f32 %v220, %v255
    %v272 = vadd.f32 %v221, %v256
    %v273 = vadd.f32 %v222, %v257
    %v274 = vadd.f32 %v223, %v258
    %v275 = vadd.f32 %v224, %v259
    %v276 = vadd.f32 %v225, %v260
    %v277 = vld [vmem:[#allocation9] sm:$0xff]
    %v278 = vld [vmem:[#allocation9 + $0x8] sm:$0xff]
    %v279 = vld [vmem:[#allocation6] sm:$0xff]
    %v280 = vld [vmem:[#allocation6 + $0x8] sm:$0xff]
    %281 = vmatpush.msra.mxu0 %v276
    %282 = vmatpush.msra.mxu0 %v275
    %283 = vmatpush.msra.mxu0 %v274
    %284 = vmatpush.msra.mxu0 %v273
    %285 = vmatpush.msra.mxu0 %v272
    %286 = vmatpush.msra.mxu0 %v271
    %287 = vmatpush.msra.mxu0 %v270
    %288 = vmatpush.msra.mxu0 %v269
    %289 = vmatpush.msra.mxu0 %v268
    %290 = vmatpush.msra.mxu0 %v267
    %291 = vmatpush.msra.mxu0 %v266
    %292 = vmatpush.msra.mxu0 %v265
    %293 = vmatpush.msra.mxu0 %v264
    %294 = vmatpush.msra.mxu0 %v263
    %295 = vmatpush.msra.mxu0 %v262
    %296 = vmatpush.msra.mxu0 %v261
    %297 = vmatmul.f32.gmra.mxu0 %v279
    %v298 = vpop.f32.mrf.mxu0
    %v299 = vadd.f32 0.0, %v298
    %300 = vmatmul.f32.gmra.mxu0 %v280
    %v301 = vpop.f32.mrf.mxu0
    %v302 = vadd.f32 0.0, %v301
    %303 = vdwg.mxu0
    %v304 = vadd.f32 %v277, %v299
    %v305 = vadd.f32 %v278, %v302
    %306 = vst [vmem:[#allocation9] sm:$0xff] %v304
    %307 = vst [vmem:[#allocation9 + $0x8] sm:$0xff] %v305
    // Predicated region
    $region34: #{tpu_custom_call.1} parent=1 // pred_check
      _
    $region35: #{tpu_custom_call.1} parent=1 // pred_check_branch
      %309 = sbr.rel (0) target = $region37
    $region36: #{tpu_custom_call.1} parent=1 // pred_region
      %311 = vsyncadd [#allocation4], 0
      %s312 = sshll.u32 [#allocation9], 4
      %s313 = int_to_ptr.vmem [resolvable:$true] %s312
      %s314 = sshll.u32 %s4, 4
      %s315 = int_to_ptr.hbm [resolvable:$true] %s314
      %320 = dma.vmem_to_hbm [thread:$0]  %s313, 256, %s315, [#allocation4], 128, 128, 8
    $region37: #{tpu_custom_call.1} parent=1 // pred_fallthru
      _
    // Predicated region
    $region38: #{tpu_custom_call.1} parent=1 // pred_check
      _
    $region39: #{tpu_custom_call.1} parent=1 // pred_check_branch
      %322 = sbr.rel (0) target = $region41
    $region40: #{tpu_custom_call.1} parent=1 // pred_region
      %324 = dma.done [#allocation4], 256
    $region41: #{tpu_custom_call.1} parent=1 // pred_fallthru
      _
    %325 = vsyncpa [#allocation3], 1
    %326 = vsyncpa [#allocation8], 1
    %327 = vsyncpa [#allocation4], 1
    %328 = vsyncpa [#allocation5], 1

</llo_original>
